<compile_context>
chip_gen: v6e
topology: v6e:2x2x1
jax: 0.10.0
libtpu: 0.0.40
codegen_flags: <defaults>
</compile_context>

<pallas_src>
import math
from functools import partial

import jax
import jax.numpy as jnp
from jax.experimental import pallas as pl
from jax.experimental.pallas import tpu as pltpu


def _arcface_tile_kernel(labels_ref, emb_ref, winv_ref, w_ref,   # inputs
                         m_ref, s_ref, t_ref,                    # outputs (per-chunk partials)
                         emb_bf16_ref,                           # scratch
                         *, classes_per_chunk, class_tile):
    c = pl.program_id(0)          # class chunk (parallel -> both TCs on v7x)
    k = pl.program_id(1)          # class tile inside the chunk (reduction)
    B = emb_ref.shape[0]
    TC = class_tile

    # --- per-chunk init: normalize embeddings once, reset online-LSE state ---
    @pl.when(k == 0)
    def _():
        e = emb_ref[...].astype(jnp.float32)
        inv = jax.lax.rsqrt(
            jnp.maximum(jnp.sum(e * e, axis=1, keepdims=True), 1e-24))
        emb_bf16_ref[...] = (e * inv).astype(jnp.bfloat16)
        m_ref[...] = jnp.full(m_ref.shape, -jnp.inf, jnp.float32)
        s_ref[...] = jnp.zeros(s_ref.shape, jnp.float32)
        t_ref[...] = jnp.zeros(t_ref.shape, jnp.float32)

    # Scaled logits for this class tile:
    #   scale * cos(theta) = (emb_n @ W_raw) * (scale / ||w_col||)
    # bf16 operands, f32 accumulation; the f32 column-norm reciprocal (folded
    # with `scale`) is applied to the small (B, TC) output, not to W.
    logits = jnp.dot(emb_bf16_ref[...], w_ref[...],
                     preferred_element_type=jnp.float32) * winv_ref[...]

    # Accumulate the raw (un-margined) scaled target logit; margin is deferred
    # to the combine step.
    col0 = c * classes_per_chunk + k * TC
    cols = col0 + jax.lax.broadcasted_iota(jnp.int32, (B, TC), 1)
    is_tgt = cols == labels_ref[...]                       # (B, TC) via (B,1) bcast
    t_ref[0] = t_ref[0] + jnp.sum(jnp.where(is_tgt, logits, 0.0),
                                  axis=1, keepdims=True)

    # Online logsumexp over class tiles.
    m_prev = m_ref[0]
    m_new = jnp.maximum(m_prev, jnp.max(logits, axis=1, keepdims=True))
    s_ref[0] = (s_ref[0] * jnp.exp(m_prev - m_new)
                + jnp.sum(jnp.exp(logits - m_new), axis=1, keepdims=True))
    m_ref[0] = m_new


def arcface_loss(embeddings, labels, weight, *, margin_rad, scale,
                 class_tile=512, num_chunks=2):
    """ArcFace loss forward. embeddings (B,E) f32, labels (B,) int, weight (E,C)."""
    B, E = embeddings.shape
    E2, C = weight.shape
    assert E == E2

    tc = min(class_tile, C)
    assert C % tc == 0, "num_classes must be a multiple of class_tile"
    # Leading parallel chunk axis (2-way -> both TCs on v7x); fall back to 1
    # if the class count does not split evenly.
    nc = num_chunks if (num_chunks >= 1 and C % (num_chunks * tc) == 0) else 1
    cpc = C // nc                 # classes per chunk
    kt = cpc // tc                # tiles per chunk

    labels2d = labels.astype(jnp.int32).reshape(B, 1)
    w_f32 = weight.astype(jnp.float32)
    # Precompute f32 per-column inverse norms once, folded with `scale`.
    winv = (scale * jax.lax.rsqrt(
        jnp.maximum(jnp.sum(w_f32 * w_f32, axis=0, keepdims=True), 1e-24))
            ).astype(jnp.float32)                          # (1, C)
    w_bf16 = weight.astype(jnp.bfloat16)                   # streamed operand

    kernel = partial(_arcface_tile_kernel,
                     classes_per_chunk=cpc, class_tile=tc)

    part_shape = jax.ShapeDtypeStruct((nc, B, 1), jnp.float32)
    part_spec = pl.BlockSpec((1, B, 1), lambda c, k: (c, 0, 0))

    m_p, s_p, t_p = pl.pallas_call(
        kernel,
        out_shape=(part_shape, part_shape, part_shape),
        grid_spec=pltpu.PrefetchScalarGridSpec(
            num_scalar_prefetch=0,
            grid=(nc, kt),
            in_specs=[
                pl.BlockSpec((B, 1), lambda c, k: (0, 0)),              # labels
                pl.BlockSpec((B, E), lambda c, k: (0, 0)),              # embeddings
                pl.BlockSpec((1, tc), lambda c, k: (0, c * kt + k)),    # scale/||w||
                pl.BlockSpec((E, tc), lambda c, k: (0, c * kt + k)),    # W tile (bf16)
            ],
            out_specs=(part_spec, part_spec, part_spec),
            scratch_shapes=[
                pltpu.VMEM((B, E), jnp.bfloat16),   # normalized embeddings (bf16)
            ],
        ),
        compiler_params=pltpu.CompilerParams(
            dimension_semantics=("parallel", "arbitrary")),
    )(labels2d, embeddings, winv, w_bf16)

    # ---- O(B) combine: merge chunk partials, apply deferred ArcFace margin ----
    m_p = m_p[:, :, 0]                                     # (nc, B)
    s_p = s_p[:, :, 0]
    t_p = t_p[:, :, 0]
    m = jnp.max(m_p, axis=0)                               # (B,)
    s = jnp.sum(s_p * jnp.exp(m_p - m), axis=0)            # (B,)
    tgt_scaled = jnp.sum(t_p, axis=0)                      # (B,)  scale*cos(theta_y)

    cos_t = jnp.clip(tgt_scaled * (1.0 / scale), -1.0, 1.0)
    sin_t = jnp.sqrt(jnp.maximum(1.0 - cos_t * cos_t, 0.0))
    mod_scaled = (cos_t * math.cos(margin_rad)
                  - sin_t * math.sin(margin_rad)) * scale  # scale*cos(theta_y + m)
    # Swap the un-margined target term for the margined one inside the sum-exp.
    s_adj = s + jnp.exp(mod_scaled - m) - jnp.exp(tgt_scaled - m)
    lse = m + jnp.log(s_adj)
    return jnp.mean(lse - mod_scaled)


# ------------------------------ references ---------------------------------
def arcface_ref_f32(embeddings, labels, weight, margin_rad, scale):
    """Pure-JAX f32 reference of pytorch-metric-learning ArcFaceLoss forward."""
    e = embeddings / jnp.maximum(
        jnp.linalg.norm(embeddings, axis=1, keepdims=True), 1e-12)
    w = weight / jnp.maximum(
        jnp.linalg.norm(weight, axis=0, keepdims=True), 1e-12)
    cosine = e @ w
    rows = jnp.arange(e.shape[0])
    tgt = cosine[rows, labels]
    mod = jnp.cos(jnp.arccos(jnp.clip(tgt, -1.0, 1.0)) + margin_rad)
    logits = cosine.at[rows, labels].set(mod) * scale
    lse = jax.scipy.special.logsumexp(logits, axis=1)
    return jnp.mean(lse - logits[rows, labels])


def arcface_ref_bf16(embeddings, labels, weight, margin_rad, scale):
    """Reference mirroring the kernel's numerics (bf16 matmul, f32 norms)."""
    e = embeddings.astype(jnp.float32)
    e = e * jax.lax.rsqrt(jnp.maximum(jnp.sum(e * e, axis=1, keepdims=True), 1e-24))
    winv = scale * jax.lax.rsqrt(
        jnp.maximum(jnp.sum(weight.astype(jnp.float32) ** 2, axis=0, keepdims=True), 1e-24))
    logits = jnp.dot(e.astype(jnp.bfloat16), weight.astype(jnp.bfloat16),
                     preferred_element_type=jnp.float32) * winv
    rows = jnp.arange(e.shape[0])
    tgt_scaled = logits[rows, labels]
    cos_t = jnp.clip(tgt_scaled / scale, -1.0, 1.0)
    sin_t = jnp.sqrt(jnp.maximum(1.0 - cos_t * cos_t, 0.0))
    mod_scaled = (cos_t * math.cos(margin_rad) - sin_t * math.sin(margin_rad)) * scale
    logits = logits.at[rows, labels].set(mod_scaled)
    lse = jax.scipy.special.logsumexp(logits, axis=1)
    return jnp.mean(lse - mod_scaled)


if __name__ == "__main__":
    # num_classes=1024, embedding_size=128, margin=0.5, scale=64
    B, E, C = 8, 128, 1024
    key = jax.random.PRNGKey(0)
    k1, k2, k3 = jax.random.split(key, 3)

    embeddings = jax.random.normal(k1, (B, E), jnp.float32)
    # Deterministic in-script init of the ArcFace class-weight matrix W (E, C).
    W = 0.01 * jax.random.normal(k2, (E, C), jnp.float32)
    labels = jax.random.randint(k3, (B,), 0, C, jnp.int32)

    # Module passes margin-in-degrees = 57.3 * margin; PML converts to radians.
    margin_rad = math.radians(57.3 * 0.5)
    scale = 64.0

    loss = arcface_loss(embeddings, labels, W, margin_rad=margin_rad,
                        scale=scale, class_tile=256, num_chunks=2)
    jax.block_until_ready(loss)

    # Exactness of the tiling / online-logsumexp / deferred-margin algorithm
    # (same bf16-operand matmul precision as the kernel).
    ref_bf16 = arcface_ref_bf16(embeddings, labels, W, margin_rad, scale)
    assert jnp.allclose(loss, ref_bf16, rtol=2e-3, atol=2e-3), (loss, ref_bf16)

    # Agreement with the full-f32 ArcFace forward, up to bf16 matmul precision.
    ref_f32 = arcface_ref_f32(embeddings, labels, W, margin_rad, scale)
    assert jnp.allclose(loss, ref_f32, rtol=2e-2, atol=2e-2), (loss, ref_f32)

    print("KERNEL_OK")
</pallas_src>

<mosaic_0001>
module attributes {stable_mosaic.version = 11 : i64} {
  func.func @_arcface_tile_kernel(%arg0: i32, %arg1: i32, %arg2: memref<8x1xi32, #tpu.memory_space<vmem>>, %arg3: memref<8x128xf32, #tpu.memory_space<vmem>>, %arg4: memref<1x256xf32, #tpu.memory_space<vmem>>, %arg5: memref<128x256xbf16, #tpu.memory_space<vmem>>, %arg6: memref<1x8x1xf32, #tpu.memory_space<vmem>>, %arg7: memref<1x8x1xf32, #tpu.memory_space<vmem>>, %arg8: memref<1x8x1xf32, #tpu.memory_space<vmem>>, %arg9: memref<8x128xbf16, #tpu.memory_space<vmem>>) attributes {dimension_semantics = [#tpu.dimension_semantics<parallel>, #tpu.dimension_semantics<arbitrary>], iteration_bounds = array<i64: 2, 2>, scalar_prefetch = 0 : i64, scratch_operands = 1 : i64, tpu.core_type = #tpu.core_type<tc>, window_params = [{pipeline_mode = #tpu.pipeline_mode<synchronous>, transform_indices = @transform_0, window_bounds = array<i64: 8, 1>}, {pipeline_mode = #tpu.pipeline_mode<synchronous>, transform_indices = @transform_1, window_bounds = array<i64: 8, 128>}, {transform_indices = @transform_2, window_bounds = array<i64: 1, 256>}, {transform_indices = @transform_3, window_bounds = array<i64: 128, 256>}, {transform_indices = @transform_4, window_bounds = array<i64: 1, 8, 1>}, {transform_indices = @transform_5, window_bounds = array<i64: 1, 8, 1>}, {transform_indices = @transform_6, window_bounds = array<i64: 1, 8, 1>}]} {
    %c0_i32 = arith.constant 0 : i32
    %0 = arith.cmpi eq, %arg1, %c0_i32 : i32
    %1 = arith.extui %0 : i1 to i32
    %c0_i32_0 = arith.constant 0 : i32
    %2 = arith.cmpi ne, %1, %c0_i32_0 : i32
    scf.if %2 {
      %c0_30 = arith.constant 0 : index
      %c0_31 = arith.constant 0 : index
      %50 = vector.load %arg3[%c0_30, %c0_31] : memref<8x128xf32, #tpu.memory_space<vmem>>, vector<8x128xf32>
      %51 = arith.mulf %50, %50 : vector<8x128xf32>
      %cst_32 = arith.constant dense<0.000000e+00> : vector<8xf32>
      %52 = vector.multi_reduction <add>, %51, %cst_32 [1] : vector<8x128xf32> to vector<8xf32>
      %53 = vector.shape_cast %52 : vector<8xf32> to vector<8x1xf32>
      %cst_33 = arith.constant 1.000000e-24 : f32
      %54 = vector.broadcast %cst_33 : f32 to vector<8x1xf32>
      %55 = arith.maximumf %53, %54 : vector<8x1xf32>
      %56 = math.rsqrt %55 : vector<8x1xf32>
      %57 = vector.broadcast %56 : vector<8x1xf32> to vector<8x128xf32>
      %58 = arith.mulf %50, %57 : vector<8x128xf32>
      %59 = arith.truncf %58 : vector<8x128xf32> to vector<8x128xbf16>
      %c0_34 = arith.constant 0 : index
      %c0_35 = arith.constant 0 : index
      %60 = vector.load %arg9[%c0_34, %c0_35] : memref<8x128xbf16, #tpu.memory_space<vmem>>, vector<8x128xbf16>
      tpu.vector_store %arg9[%c0_34, %c0_35], %59 {strides = array<i32>} : memref<8x128xbf16, #tpu.memory_space<vmem>>, vector<8x128xbf16>,
      %cst_36 = arith.constant 0xFF800000 : f32
      %61 = vector.broadcast %cst_36 : f32 to vector<1x8x1xf32>
      %c0_37 = arith.constant 0 : index
      %c0_38 = arith.constant 0 : index
      %c0_39 = arith.constant 0 : index
      %62 = vector.load %arg6[%c0_37, %c0_38, %c0_39] : memref<1x8x1xf32, #tpu.memory_space<vmem>>, vector<1x8x1xf32>
      tpu.vector_store %arg6[%c0_37, %c0_38, %c0_39], %61 {strides = array<i32>} : memref<1x8x1xf32, #tpu.memory_space<vmem>>, vector<1x8x1xf32>,
      %cst_40 = arith.constant 0.000000e+00 : f32
      %63 = vector.broadcast %cst_40 : f32 to vector<1x8x1xf32>
      %c0_41 = arith.constant 0 : index
      %c0_42 = arith.constant 0 : index
      %c0_43 = arith.constant 0 : index
      %64 = vector.load %arg7[%c0_41, %c0_42, %c0_43] : memref<1x8x1xf32, #tpu.memory_space<vmem>>, vector<1x8x1xf32>
      tpu.vector_store %arg7[%c0_41, %c0_42, %c0_43], %63 {strides = array<i32>} : memref<1x8x1xf32, #tpu.memory_space<vmem>>, vector<1x8x1xf32>,
      %cst_44 = arith.constant 0.000000e+00 : f32
      %65 = vector.broadcast %cst_44 : f32 to vector<1x8x1xf32>
      %c0_45 = arith.constant 0 : index
      %c0_46 = arith.constant 0 : index
      %c0_47 = arith.constant 0 : index
      %66 = vector.load %arg8[%c0_45, %c0_46, %c0_47] : memref<1x8x1xf32, #tpu.memory_space<vmem>>, vector<1x8x1xf32>
      tpu.vector_store %arg8[%c0_45, %c0_46, %c0_47], %65 {strides = array<i32>} : memref<1x8x1xf32, #tpu.memory_space<vmem>>, vector<1x8x1xf32>,
    } else {
    }
    %c0 = arith.constant 0 : index
    %c0_1 = arith.constant 0 : index
    %3 = vector.load %arg9[%c0, %c0_1] : memref<8x128xbf16, #tpu.memory_space<vmem>>, vector<8x128xbf16>
    %c0_2 = arith.constant 0 : index
    %c0_3 = arith.constant 0 : index
    %4 = vector.load %arg5[%c0_2, %c0_3] : memref<128x256xbf16, #tpu.memory_space<vmem>>, vector<128x256xbf16>
    %cst = arith.constant dense<0.000000e+00> : vector<8x256xf32>
    %5 = tpu.matmul %3, %4, %cst {dimension_numbers = #tpu.dot_dimension_numbers<[1], [0], [0], [1], [0, 0, 1, 1], [], []>} : vector<8x128xbf16>, vector<128x256xbf16>, vector<8x256xf32> -> vector<8x256xf32>
    %c0_4 = arith.constant 0 : index
    %c0_5 = arith.constant 0 : index
    %6 = vector.load %arg4[%c0_4, %c0_5] : memref<1x256xf32, #tpu.memory_space<vmem>>, vector<1x256xf32>
    %7 = vector.broadcast %6 : vector<1x256xf32> to vector<8x256xf32>
    %8 = arith.mulf %5, %7 : vector<8x256xf32>
    %c512_i32 = arith.constant 512 : i32
    %9 = arith.muli %arg0, %c512_i32 : i32
    %c256_i32 = arith.constant 256 : i32
    %10 = arith.muli %arg1, %c256_i32 : i32
    %11 = arith.addi %9, %10 : i32
    %12 = tpu.iota {dimensions = array<i32: 1>} : vector<8x256xi32>
    %13 = vector.broadcast %11 : i32 to vector<8x256xi32>
    %14 = arith.addi %13, %12 : vector<8x256xi32>
    %c0_6 = arith.constant 0 : index
    %c0_7 = arith.constant 0 : index
    %15 = vector.load %arg2[%c0_6, %c0_7] : memref<8x1xi32, #tpu.memory_space<vmem>>, vector<8x1xi32>
    %16 = vector.broadcast %15 : vector<8x1xi32> to vector<8x256xi32>
    %17 = arith.cmpi eq, %14, %16 : vector<8x256xi32>
    %c0_8 = arith.constant 0 : index
    %c0_9 = arith.constant 0 : index
    %c0_10 = arith.constant 0 : index
    %18 = vector.load %arg8[%c0_8, %c0_9, %c0_10] : memref<1x8x1xf32, #tpu.memory_space<vmem>>, vector<1x8x1xf32>
    %19 = vector.shape_cast %18 : vector<1x8x1xf32> to vector<8x1xf32>
    %cst_11 = arith.constant 0.000000e+00 : f32
    %20 = vector.broadcast %cst_11 : f32 to vector<8x256xf32>
    %21 = arith.select %17, %8, %20 : vector<8x256xi1>, vector<8x256xf32>
    %cst_12 = arith.constant dense<0.000000e+00> : vector<8xf32>
    %22 = vector.multi_reduction <add>, %21, %cst_12 [1] : vector<8x256xf32> to vector<8xf32>
    %23 = vector.shape_cast %22 : vector<8xf32> to vector<8x1xf32>
    %24 = arith.addf %19, %23 : vector<8x1xf32>
    %c0_13 = arith.constant 0 : index
    %c0_14 = arith.constant 0 : index
    %c0_15 = arith.constant 0 : index
    %25 = vector.load %arg8[%c0_13, %c0_14, %c0_15] : memref<1x8x1xf32, #tpu.memory_space<vmem>>, vector<1x8x1xf32>
    %26 = vector.shape_cast %25 : vector<1x8x1xf32> to vector<8x1xf32>
    %27 = vector.shape_cast %24 : vector<8x1xf32> to vector<1x8x1xf32>
    tpu.vector_store %arg8[%c0_13, %c0_14, %c0_15], %27 {strides = array<i32>} : memref<1x8x1xf32, #tpu.memory_space<vmem>>, vector<1x8x1xf32>,
    %c0_16 = arith.constant 0 : index
    %c0_17 = arith.constant 0 : index
    %c0_18 = arith.constant 0 : index
    %28 = vector.load %arg6[%c0_16, %c0_17, %c0_18] : memref<1x8x1xf32, #tpu.memory_space<vmem>>, vector<1x8x1xf32>
    %29 = vector.shape_cast %28 : vector<1x8x1xf32> to vector<8x1xf32>
    %cst_19 = arith.constant dense<0xFF800000> : vector<8xf32>
    %30 = vector.multi_reduction <maximumf>, %8, %cst_19 [1] : vector<8x256xf32> to vector<8xf32>
    %31 = vector.shape_cast %30 : vector<8xf32> to vector<8x1xf32>
    %32 = arith.maximumf %29, %31 : vector<8x1xf32>
    %c0_20 = arith.constant 0 : index
    %c0_21 = arith.constant 0 : index
    %c0_22 = arith.constant 0 : index
    %33 = vector.load %arg7[%c0_20, %c0_21, %c0_22] : memref<1x8x1xf32, #tpu.memory_space<vmem>>, vector<1x8x1xf32>
    %34 = vector.shape_cast %33 : vector<1x8x1xf32> to vector<8x1xf32>
    %35 = arith.subf %29, %32 : vector<8x1xf32>
    %36 = math.exp %35 : vector<8x1xf32>
    %37 = arith.mulf %34, %36 : vector<8x1xf32>
    %38 = vector.broadcast %32 : vector<8x1xf32> to vector<8x256xf32>
    %39 = arith.subf %8, %38 : vector<8x256xf32>
    %40 = math.exp %39 : vector<8x256xf32>
    %cst_23 = arith.constant dense<0.000000e+00> : vector<8xf32>
    %41 = vector.multi_reduction <add>, %40, %cst_23 [1] : vector<8x256xf32> to vector<8xf32>
    %42 = vector.shape_cast %41 : vector<8xf32> to vector<8x1xf32>
    %43 = arith.addf %37, %42 : vector<8x1xf32>
    %c0_24 = arith.constant 0 : index
    %c0_25 = arith.constant 0 : index
    %c0_26 = arith.constant 0 : index
    %44 = vector.load %arg7[%c0_24, %c0_25, %c0_26] : memref<1x8x1xf32, #tpu.memory_space<vmem>>, vector<1x8x1xf32>
    %45 = vector.shape_cast %44 : vector<1x8x1xf32> to vector<8x1xf32>
    %46 = vector.shape_cast %43 : vector<8x1xf32> to vector<1x8x1xf32>
    tpu.vector_store %arg7[%c0_24, %c0_25, %c0_26], %46 {strides = array<i32>} : memref<1x8x1xf32, #tpu.memory_space<vmem>>, vector<1x8x1xf32>,
    %c0_27 = arith.constant 0 : index
    %c0_28 = arith.constant 0 : index
    %c0_29 = arith.constant 0 : index
    %47 = vector.load %arg6[%c0_27, %c0_28, %c0_29] : memref<1x8x1xf32, #tpu.memory_space<vmem>>, vector<1x8x1xf32>
    %48 = vector.shape_cast %47 : vector<1x8x1xf32> to vector<8x1xf32>
    %49 = vector.shape_cast %32 : vector<8x1xf32> to vector<1x8x1xf32>
    tpu.vector_store %arg6[%c0_27, %c0_28, %c0_29], %49 {strides = array<i32>} : memref<1x8x1xf32, #tpu.memory_space<vmem>>, vector<1x8x1xf32>,
    return
  }
  func.func @transform_0(%arg0: i32, %arg1: i32) -> (i32, i32) {
    %c0_i32 = arith.constant 0 : i32
    %c0_i32_0 = arith.constant 0 : i32
    %c0_i32_1 = arith.constant 0 : i32
    return %c0_i32, %c0_i32_0 : i32, i32
  }
  func.func @transform_1(%arg0: i32, %arg1: i32) -> (i32, i32) {
    %c0_i32 = arith.constant 0 : i32
    %c0_i32_0 = arith.constant 0 : i32
    %c0_i32_1 = arith.constant 0 : i32
    return %c0_i32, %c0_i32_0 : i32, i32
  }
  func.func @transform_2(%arg0: i32, %arg1: i32) -> (i32, i32) {
    %c2_i32 = arith.constant 2 : i32
    %0 = arith.muli %arg0, %c2_i32 : i32
    %1 = arith.addi %0, %arg1 : i32
    %c0_i32 = arith.constant 0 : i32
    %c0_i32_0 = arith.constant 0 : i32
    return %c0_i32, %1 : i32, i32
  }
  func.func @transform_3(%arg0: i32, %arg1: i32) -> (i32, i32) {
    %c2_i32 = arith.constant 2 : i32
    %0 = arith.muli %arg0, %c2_i32 : i32
    %1 = arith.addi %0, %arg1 : i32
    %c0_i32 = arith.constant 0 : i32
    %c0_i32_0 = arith.constant 0 : i32
    return %c0_i32, %1 : i32, i32
  }
  func.func @transform_4(%arg0: i32, %arg1: i32) -> (i32, i32, i32) {
    %c0_i32 = arith.constant 0 : i32
    %c0_i32_0 = arith.constant 0 : i32
    %c0_i32_1 = arith.constant 0 : i32
    return %arg0, %c0_i32, %c0_i32_0 : i32, i32, i32
  }
  func.func @transform_5(%arg0: i32, %arg1: i32) -> (i32, i32, i32) {
    %c0_i32 = arith.constant 0 : i32
    %c0_i32_0 = arith.constant 0 : i32
    %c0_i32_1 = arith.constant 0 : i32
    return %arg0, %c0_i32, %c0_i32_0 : i32, i32, i32
  }
  func.func @transform_6(%arg0: i32, %arg1: i32) -> (i32, i32, i32) {
    %c0_i32 = arith.constant 0 : i32
    %c0_i32_0 = arith.constant 0 : i32
    %c0_i32_1 = arith.constant 0 : i32
    return %arg0, %c0_i32, %c0_i32_0 : i32, i32, i32
  }
}

</mosaic_0001>

<llo_original>
// kernel: tpu_custom_call.1
$region0: #{tpu_custom_call.1}
  #allocation0 [shape = 'u32[]', space=smem, size = 0x4, offset = 0x4, fixed_abs, tag = 'smem constant byte address 0x4 - core index']
  #allocation1 [shape = 'u32[144,128]{1,0:T(1,128)}', space=vmem, size = 0x12000, scoped, tag = 'internal scratch']
  #allocation2 [shape = 'bf16[8,128]{1,0:T(8,128)(2,1)}', space=vmem, size = 0x800, scoped, tag = 'scratch operand']
  %s0 = inlined_call_operand.vmem [shape: s32[8,1], index: 0, kind: input, shape index: {}]
  %s1 = inlined_call_operand.vmem [shape: f32[8,128], index: 1, kind: input, shape index: {}]
  %s2 = inlined_call_operand.hbm [shape: f32[1,1024], index: 2, kind: input, shape index: {}]
  %s3 = inlined_call_operand.hbm [shape: bf16[128,1024], index: 3, kind: input, shape index: {}]
  %s4 = inlined_call_operand.vmem [shape: f32[2,8,1], index: 4, kind: output, shape index: {0}]
  %s5 = inlined_call_operand.vmem [shape: f32[2,8,1], index: 5, kind: output, shape index: {1}]
  %s6 = inlined_call_operand.vmem [shape: f32[2,8,1], index: 6, kind: output, shape index: {2}]
  %7 = xla_tuple %s4, %s5, %s6
  %s8 = sld [smem:[#allocation0]]
  $region77: #{tpu_custom_call.1} parent=0
    _
  %s10 = ssub.s32 1, %s8
  %s11 = scalar_select 0, %s10, %s8
  $region1: #{tpu_custom_call.1} parent=0
    #allocation3 [shape = 'u8[2048]{0}', space=vmem, size = 0x800, scoped, tag = 'input window, operand 2']
    #allocation4 [shape = 's32[2]{0}', space=sflag, size = 0x8, scoped, tag = 'scoped memory for tpu_custom_call.1']
    #allocation5 [shape = 'u8[131072]{0}', space=vmem, size = 0x20000, scoped, tag = 'input window, operand 3']
    #allocation6 [shape = 's32[2]{0}', space=sflag, size = 0x8, scoped, tag = 'scoped memory for tpu_custom_call.1']
    %12 = vsyncpa [#allocation4], 0
    %s13 = scalar_lea.sflag [#allocation4], 1
    %14 = vsyncpa %s13, 0
    %15 = vsyncpa [#allocation6], 0
    %s16 = scalar_lea.sflag [#allocation6], 1
    %17 = vsyncpa %s16, 0
    loop: start=0, step=1, limit=6
    $region2: #{tpu_custom_call.1} parent=1 // loop_pre_header
      _
    $region3: #{tpu_custom_call.1} parent=1 // loop_header
      %s19 = sphi 0, %s23
      %p20 = scmp.ge.s32.totalorder %s19, 6
      %s26 = sphi 0, %s38
      %s27 = sphi 0, %s34
      %s28 = sphi 0, %s26
      %s29 = sphi 0, %s27
      %s30 = sphi 0, %s28
      %s31 = sphi 0, %s29
      %s39 = sphi 0, %s39
      %s41 = sphi 0, %s39
      %s42 = sphi 0, %s41
      %s56 = sphi 0, %s42
      %s60 = sphi 0, %s60
      %s62 = sphi 0, %s60
      %s63 = sphi 0, %s62
      %s77 = sphi 0, %s63
      %s87 = sphi 0, %s89
      %s90 = sphi 0, %s87
      %s91 = sphi 0, %s90
      %s107 = sphi 0, %s91
      %s117 = sphi 0, %s119
      %s120 = sphi 0, %s117
      %s121 = sphi 0, %s120
      %s137 = sphi 0, %s121
      %s143 = sphi 0, %s145
      %s146 = sphi 0, %s143
      %s147 = sphi 0, %s146
      %s163 = sphi 0, %s147
      %s169 = sphi 0, %s171
      %s172 = sphi 0, %s169
      %s173 = sphi 0, %s172
      %s189 = sphi 0, %s173
      %s195 = sphi 0, %s197
      %s198 = sphi 0, %s195
      %s199 = sphi 0, %s198
      %s215 = sphi 0, %s199
    $region4: #{tpu_custom_call.1} parent=1 // loop_header_branch
      %22 = sbr.rel (%p20) target = $region8
    $region5: #{tpu_custom_call.1} parent=1 // loop_body
      %s24 = ssub.s32 %s19, 1
      %s25 = ssub.s32 %s19, 2
      %s32 = sadd.s32 1, %s27
      %p33 = scmp.ge.s32.totalorder %s32, 2
      %s34 = scalar_select %p33, 0, %s32
      %s35 = sadd.s32 1, %s26
      %s36 = scalar_select %p33, %s35, %s26
      %p37 = scmp.ge.s32.totalorder %s36, 2
      %s38 = scalar_select %p37, 0, %s36
      %s40 = sadd.s32 %s39, 1
      %p43 = scmp.eq.s32.totalorder %s19, 3
      %p44 = scmp.ne.s32.totalorder %s39, %s41
      %p45 = scmp.eq.s32.totalorder %s19, 0
      %p46 = por %p44, %p45
      %p47 = scmp.ne.s32.totalorder %s39, %s41
      %p48 = scmp.eq.s32.totalorder %s24, 3
      %p49 = por %p47, %p48
      %p50 = scmp.ne.s32.totalorder %s41, %s42
      %p51 = scmp.eq.s32.totalorder %s24, 0
      %p52 = por %p50, %p51
      %p53 = scmp.ne.s32.totalorder %s41, %s42
      %p54 = scmp.eq.s32.totalorder %s25, 3
      %p55 = por %p53, %p54
      %p57 = scmp.ne.s32.totalorder %s42, %s56
      %p58 = scmp.eq.s32.totalorder %s25, 0
      %p59 = por %p57, %p58
      %s61 = sadd.s32 %s60, 1
      %p64 = scmp.eq.s32.totalorder %s19, 3
      %p65 = scmp.ne.s32.totalorder %s60, %s62
      %p66 = scmp.eq.s32.totalorder %s19, 0
      %p67 = por %p65, %p66
      %p68 = scmp.ne.s32.totalorder %s60, %s62
      %p69 = scmp.eq.s32.totalorder %s24, 3
      %p70 = por %p68, %p69
      %p71 = scmp.ne.s32.totalorder %s62, %s63
      %p72 = scmp.eq.s32.totalorder %s24, 0
      %p73 = por %p71, %p72
      %p74 = scmp.ne.s32.totalorder %s62, %s63
      %p75 = scmp.eq.s32.totalorder %s25, 3
      %p76 = por %p74, %p75
      %p78 = scmp.ne.s32.totalorder %s63, %s77
      %p79 = scmp.eq.s32.totalorder %s25, 0
      %p80 = por %p78, %p79
      %s81 = smul.u32 %s26, 2
      %s82 = sadd.s32 %s81, %s27
      %s83 = smul.u32 %s38, 2
      %s84 = sadd.s32 %s83, %s34
      %s85 = ssub.s32 %s82, %s84
      %p86 = scmp.eq.s32.totalorder %s85, 0
      %s88 = sadd.s32 %s87, 1
      %s89 = scalar_select %p86, %s87, %s88
      %p92 = pneg %p86
      %p93 = scmp.eq.s32.totalorder %s19, 3
      %p94 = por %p92, %p93
      %p95 = scmp.ne.s32.totalorder %s87, %s90
      %p96 = scmp.eq.s32.totalorder %s19, 0
      %p97 = por %p95, %p96
      %p98 = scmp.ne.s32.totalorder %s87, %s90
      %p99 = scmp.eq.s32.totalorder %s24, 3
      %p100 = por %p98, %p99
      %p101 = scmp.ne.s32.totalorder %s90, %s91
      %p102 = scmp.eq.s32.totalorder %s24, 0
      %p103 = por %p101, %p102
      %p104 = scmp.ne.s32.totalorder %s90, %s91
      %p105 = scmp.eq.s32.totalorder %s25, 3
      %p106 = por %p104, %p105
      %p108 = scmp.ne.s32.totalorder %s91, %s107
      %p109 = scmp.eq.s32.totalorder %s25, 0
      %p110 = por %p108, %p109
      %s111 = smul.u32 %s26, 2
      %s112 = sadd.s32 %s111, %s27
      %s113 = smul.u32 %s38, 2
      %s114 = sadd.s32 %s113, %s34
      %s115 = ssub.s32 %s112, %s114
      %p116 = scmp.eq.s32.totalorder %s115, 0
      %s118 = sadd.s32 %s117, 1
      %s119 = scalar_select %p116, %s117, %s118
      %p122 = pneg %p116
      %p123 = scmp.eq.s32.totalorder %s19, 3
      %p124 = por %p122, %p123
      %p125 = scmp.ne.s32.totalorder %s117, %s120
      %p126 = scmp.eq.s32.totalorder %s19, 0
      %p127 = por %p125, %p126
      %p128 = scmp.ne.s32.totalorder %s117, %s120
      %p129 = scmp.eq.s32.totalorder %s24, 3
      %p130 = por %p128, %p129
      %p131 = scmp.ne.s32.totalorder %s120, %s121
      %p132 = scmp.eq.s32.totalorder %s24, 0
      %p133 = por %p131, %p132
      %p134 = scmp.ne.s32.totalorder %s120, %s121
      %p135 = scmp.eq.s32.totalorder %s25, 3
      %p136 = por %p134, %p135
      %p138 = scmp.ne.s32.totalorder %s121, %s137
      %p139 = scmp.eq.s32.totalorder %s25, 0
      %p140 = por %p138, %p139
      %s141 = ssub.s32 %s26, %s38
      %p142 = scmp.eq.s32.totalorder %s141, 0
      %s144 = sadd.s32 %s143, 1
      %s145 = scalar_select %p142, %s143, %s144
      %p148 = pneg %p142
      %p149 = scmp.eq.s32.totalorder %s19, 3
      %p150 = por %p148, %p149
      %p151 = scmp.ne.s32.totalorder %s143, %s146
      %p152 = scmp.eq.s32.totalorder %s19, 0
      %p153 = por %p151, %p152
      %p154 = scmp.ne.s32.totalorder %s143, %s146
      %p155 = scmp.eq.s32.totalorder %s24, 3
      %p156 = por %p154, %p155
      %p157 = scmp.ne.s32.totalorder %s146, %s147
      %p158 = scmp.eq.s32.totalorder %s24, 0
      %p159 = por %p157, %p158
      %p160 = scmp.ne.s32.totalorder %s146, %s147
      %p161 = scmp.eq.s32.totalorder %s25, 3
      %p162 = por %p160, %p161
      %p164 = scmp.ne.s32.totalorder %s147, %s163
      %p165 = scmp.eq.s32.totalorder %s25, 0
      %p166 = por %p164, %p165
      %s167 = ssub.s32 %s26, %s38
      %p168 = scmp.eq.s32.totalorder %s167, 0
      %s170 = sadd.s32 %s169, 1
      %s171 = scalar_select %p168, %s169, %s170
      %p174 = pneg %p168
      %p175 = scmp.eq.s32.totalorder %s19, 3
      %p176 = por %p174, %p175
      %p177 = scmp.ne.s32.totalorder %s169, %s172
      %p178 = scmp.eq.s32.totalorder %s19, 0
      %p179 = por %p177, %p178
      %p180 = scmp.ne.s32.totalorder %s169, %s172
      %p181 = scmp.eq.s32.totalorder %s24, 3
      %p182 = por %p180, %p181
      %p183 = scmp.ne.s32.totalorder %s172, %s173
      %p184 = scmp.eq.s32.totalorder %s24, 0
      %p185 = por %p183, %p184
      %p186 = scmp.ne.s32.totalorder %s172, %s173
      %p187 = scmp.eq.s32.totalorder %s25, 3
      %p188 = por %p186, %p187
      %p190 = scmp.ne.s32.totalorder %s173, %s189
      %p191 = scmp.eq.s32.totalorder %s25, 0
      %p192 = por %p190, %p191
      %s193 = ssub.s32 %s26, %s38
      %p194 = scmp.eq.s32.totalorder %s193, 0
      %s196 = sadd.s32 %s195, 1
      %s197 = scalar_select %p194, %s195, %s196
      %p200 = pneg %p194
      %p201 = scmp.eq.s32.totalorder %s19, 3
      %p202 = por %p200, %p201
      %p203 = scmp.ne.s32.totalorder %s195, %s198
      %p204 = scmp.eq.s32.totalorder %s19, 0
      %p205 = por %p203, %p204
      %p206 = scmp.ne.s32.totalorder %s195, %s198
      %p207 = scmp.eq.s32.totalorder %s24, 3
      %p208 = por %p206, %p207
      %p209 = scmp.ne.s32.totalorder %s198, %s199
      %p210 = scmp.eq.s32.totalorder %s24, 0
      %p211 = por %p209, %p210
      %p212 = scmp.ne.s32.totalorder %s198, %s199
      %p213 = scmp.eq.s32.totalorder %s25, 3
      %p214 = por %p212, %p213
      %p216 = scmp.ne.s32.totalorder %s199, %s215
      %p217 = scmp.eq.s32.totalorder %s25, 0
      %p218 = por %p216, %p217
      %p219 = scmp.le.s32.totalorder 1, %s19
      %p220 = scmp.lt.s32.totalorder %s19, 5
      %p221 = pnand %p219, %p220
      %p222 = pneg %p221
      // Predicated region
      $region9: #{tpu_custom_call.1} parent=5 // pred_check
        _
      $region10: #{tpu_custom_call.1} parent=5 // pred_check_branch
        %224 = sbr.rel (%p221) target = $region12
      $region11: #{tpu_custom_call.1} parent=5 // pred_region
        %s225 = ssub.s32 %s19, 1
        // Predicated region
        $region13: #{tpu_custom_call.1} parent=11 // pred_check
          %p226 = pneg %p52
        $region14: #{tpu_custom_call.1} parent=11 // pred_check_branch
          %228 = sbr.rel (%p226) target = $region16
        $region15: #{tpu_custom_call.1} parent=11 // pred_region
          _
        $region16: #{tpu_custom_call.1} parent=11 // pred_fallthru
          _
        // Predicated region
        $region17: #{tpu_custom_call.1} parent=11 // pred_check
          %p229 = pneg %p73
        $region18: #{tpu_custom_call.1} parent=11 // pred_check_branch
          %231 = sbr.rel (%p229) target = $region20
        $region19: #{tpu_custom_call.1} parent=11 // pred_region
          _
        $region20: #{tpu_custom_call.1} parent=11 // pred_fallthru
          _
      $region12: #{tpu_custom_call.1} parent=5 // pred_fallthru
        _
      %p232 = scmp.lt.s32.totalorder %s19, 4
      // Predicated region
      $region21: #{tpu_custom_call.1} parent=5 // pred_check
        %p233 = pneg %p232
      $region22: #{tpu_custom_call.1} parent=5 // pred_check_branch
        %235 = sbr.rel (%p233) target = $region24
      $region23: #{tpu_custom_call.1} parent=5 // pred_region
        // Predicated region
        $region25: #{tpu_custom_call.1} parent=23 // pred_check
          %p236 = pneg %p97
        $region26: #{tpu_custom_call.1} parent=23 // pred_check_branch
          %238 = sbr.rel (%p236) target = $region28
        $region27: #{tpu_custom_call.1} parent=23 // pred_region
          %s239 = sand.u32 %s87, 1
          %s240 = scalar_lea.sflag [#allocation4], %s239
          %s241 = sand.u32 %s87, 1
          %s242 = smul.addr %s241, 2
          %s243 = scalar_lea.vmem [#allocation3], %s242
          %s244 = smul.u32 %s26, 2
          %s245 = sadd.s32 %s244, %s27
          %s246 = smul.u32 2, %s245
          %s248 = ssub.s32 32, 32
          %249 = vsyncadd %s240, %s248
          %s250 = smul.addr %s246, 16
          %s251 = scalar_lea.hbm %s2, %s250
          %s253 = sshll.u32 %s243, 4
          %s254 = int_to_ptr.vmem [resolvable:$true] %s253
          %256 = dma.hbm_to_vmem [thread:$0]  %s251, 32, %s254, %s240
        $region28: #{tpu_custom_call.1} parent=23 // pred_fallthru
          _
        // Predicated region
        $region29: #{tpu_custom_call.1} parent=23 // pred_check
          %p257 = pneg %p127
        $region30: #{tpu_custom_call.1} parent=23 // pred_check_branch
          %259 = sbr.rel (%p257) target = $region32
        $region31: #{tpu_custom_call.1} parent=23 // pred_region
          %s260 = sand.u32 %s117, 1
          %s261 = scalar_lea.sflag [#allocation6], %s260
          %s262 = sand.u32 %s117, 1
          %s263 = smul.addr %s262, 128
          %s264 = scalar_lea.vmem [#allocation5], %s263
          %s265 = smul.u32 %s26, 2
          %s266 = sadd.s32 %s265, %s27
          %s267 = smul.u32 2, %s266
          %s269 = ssub.s32 2048, 2048
          %270 = vsyncadd %s261, %s269
          %s271 = smul.addr %s267, 64
          %s272 = scalar_lea.hbm %s3, %s271
          %s273 = sshll.u32 %s264, 4
          %s274 = int_to_ptr.vmem [resolvable:$true] %s273
          %279 = dma.hbm_to_vmem [thread:$0]  %s272, 2048, %s274, %s261, 512, 128, 8
        $region32: #{tpu_custom_call.1} parent=23 // pred_fallthru
          _
      $region24: #{tpu_custom_call.1} parent=5 // pred_fallthru
        _
      %p280 = scmp.le.s32.totalorder 1, %s19
      %p281 = scmp.lt.s32.totalorder %s19, 5
      %p282 = pnand %p280, %p281
      %p283 = pneg %p282
      // Predicated region
      $region33: #{tpu_custom_call.1} parent=5 // pred_check
        _
      $region34: #{tpu_custom_call.1} parent=5 // pred_check_branch
        %285 = sbr.rel (%p282) target = $region36
      $region35: #{tpu_custom_call.1} parent=5 // pred_region
        %s286 = ssub.s32 %s19, 1
        %s287 = sand.u32 %s90, 1
        %s288 = scalar_lea.sflag [#allocation4], %s287
        %s289 = sand.u32 %s90, 1
        %s290 = smul.addr %s289, 2
        %s291 = scalar_lea.vmem [#allocation3], %s290
        // Predicated region
        $region37: #{tpu_custom_call.1} parent=35 // pred_check
          %p292 = pneg %p103
        $region38: #{tpu_custom_call.1} parent=35 // pred_check_branch
          %294 = sbr.rel (%p292) target = $region40
        $region39: #{tpu_custom_call.1} parent=35 // pred_region
          %295 = dma.done %s288, 32
        $region40: #{tpu_custom_call.1} parent=35 // pred_fallthru
          _
        %s296 = sand.u32 %s120, 1
        %s297 = scalar_lea.sflag [#allocation6], %s296
        %s298 = sand.u32 %s120, 1
        %s299 = smul.addr %s298, 128
        %s300 = scalar_lea.vmem [#allocation5], %s299
        // Predicated region
        $region41: #{tpu_custom_call.1} parent=35 // pred_check
          %p301 = pneg %p133
        $region42: #{tpu_custom_call.1} parent=35 // pred_check_branch
          %303 = sbr.rel (%p301) target = $region44
        $region43: #{tpu_custom_call.1} parent=35 // pred_region
          %304 = dma.done %s297, 2048
        $region44: #{tpu_custom_call.1} parent=35 // pred_fallthru
          _
        %p305 = pneg %p52
        %p306 = pneg %p49
        %p307 = pneg %p73
        %p308 = pneg %p70
        %s309 = sand.u32 %s90, 1
        %s310 = scalar_lea.sflag [#allocation4], %s309
        %s311 = sand.u32 %s90, 1
        %s312 = smul.addr %s311, 2
        %s313 = scalar_lea.vmem [#allocation3], %s312
        %p314 = pneg %p103
        %p315 = pneg %p100
        %s316 = sand.u32 %s120, 1
        %s317 = scalar_lea.sflag [#allocation6], %s316
        %s318 = sand.u32 %s120, 1
        %s319 = smul.addr %s318, 128
        %s320 = scalar_lea.vmem [#allocation5], %s319
        %p321 = pneg %p133
        %p322 = pneg %p130
        %p323 = pneg %p159
        %p324 = pneg %p156
        %p325 = scmp.lt.s32.totalorder %s28, 1
        %s326 = scalar_select %p325, %s28, 1
        %s327 = smul.addr %s326, 8
        %s328 = scalar_lea.vmem %s4, %s327
        %p329 = pneg %p185
        %p330 = pneg %p182
        %p331 = scmp.lt.s32.totalorder %s28, 1
        %s332 = scalar_select %p331, %s28, 1
        %s333 = smul.addr %s332, 8
        %s334 = scalar_lea.vmem %s5, %s333
        %p335 = pneg %p211
        %p336 = pneg %p208
        %p337 = scmp.lt.s32.totalorder %s28, 1
        %s338 = scalar_select %p337, %s28, 1
        %s339 = smul.addr %s338, 8
        %s340 = scalar_lea.vmem %s6, %s339
        %s341 = smul.u32 %s28, 2
        %s342 = sadd.s32 %s341, %s29
        %s343 = smul.u32 2, %s342
        %s344 = smul.u32 %s28, 2
        %s345 = sadd.s32 %s344, %s29
        %s346 = smul.u32 2, %s345
        %p347 = scmp.lt.s32.totalorder %s28, 1
        %s348 = scalar_select %p347, %s28, 1
        %s349 = smul.addr %s348, 8
        %s350 = scalar_lea.vmem %s4, %s349
        %p351 = scmp.lt.s32.totalorder %s28, 1
        %s352 = scalar_select %p351, %s28, 1
        %s353 = smul.addr %s352, 8
        %s354 = scalar_lea.vmem %s5, %s353
        %p355 = scmp.lt.s32.totalorder %s28, 1
        %s356 = scalar_select %p355, %s28, 1
        %s357 = smul.addr %s356, 8
        %s358 = scalar_lea.vmem %s6, %s357
        %p360 = scmp.eq.s32.totalorder %s29, 0
        // Predicated region
        $region45: #{tpu_custom_call.1} parent=35 // pred_check
          %p361 = pneg %p360
        $region46: #{tpu_custom_call.1} parent=35 // pred_check_branch
          %363 = sbr.rel (%p361) target = $region48
        $region47: #{tpu_custom_call.1} parent=35 // pred_region
          %v364 = vld [vmem:[%s1] sm:$0xff]
          %v365 = vmul.f32 %v364, %v364
          %366 = vadd.xlane.f32.xlu0 %v365
          %v367 = vpop.xlane.xlu0 %366
          %v368 = vmax.f32 %v367, 1e-24
          %v369 = vrsqrt.pop %v368
          %v370 = vmul.f32 %v364, %v369
          %v371 = vpack.c.bf16 %v370, %v370
          %372 = vst [vmem:[#allocation2] sm:$0xf] %v371
          %vm373 = vcmask 7168
          %374 = vst.msk [vmem:[%s350] sm:$0xff] %vm373, -inf
          %375 = vst.msk [vmem:[%s354] sm:$0xff] %vm373, 0.0
          %376 = vst.msk [vmem:[%s358] sm:$0xff] %vm373, 0.0
        $region48: #{tpu_custom_call.1} parent=35 // pred_fallthru
          _
        %v377 = vld [vmem:[#allocation2] sm:$0xf]
        %v378 = vld [vmem:[%s300] sm:$0xff]
        %v379 = vld [vmem:[%s300 + $0x8] sm:$0xff]
        %v380 = vld [vmem:[%s300 + $0x10] sm:$0xff]
        %v381 = vld [vmem:[%s300 + $0x18] sm:$0xff]
        %v382 = vld [vmem:[%s300 + $0x20] sm:$0xff]
        %v383 = vld [vmem:[%s300 + $0x28] sm:$0xff]
        %v384 = vld [vmem:[%s300 + $0x30] sm:$0xff]
        %v385 = vld [vmem:[%s300 + $0x38] sm:$0xff]
        %v386 = vld [vmem:[%s300 + $0x40] sm:$0xff]
        %v387 = vld [vmem:[%s300 + $0x48] sm:$0xff]
        %v388 = vld [vmem:[%s300 + $0x50] sm:$0xff]
        %v389 = vld [vmem:[%s300 + $0x58] sm:$0xff]
        %v390 = vld [vmem:[%s300 + $0x60] sm:$0xff]
        %v391 = vld [vmem:[%s300 + $0x68] sm:$0xff]
        %v392 = vld [vmem:[%s300 + $0x70] sm:$0xff]
        %v393 = vld [vmem:[%s300 + $0x78] sm:$0xff]
        %v410 = vunpack.c.l.b16 %v378
        %v411 = vunpack.c.h.b16 %v378
        %v412 = vunpack.c.l.b16 %v379
        %v413 = vunpack.c.h.b16 %v379
        %v414 = vunpack.c.l.b16 %v380
        %v415 = vunpack.c.h.b16 %v380
        %v416 = vunpack.c.l.b16 %v381
        %v417 = vunpack.c.h.b16 %v381
        %v418 = vunpack.c.l.b16 %v382
        %v419 = vunpack.c.h.b16 %v382
        %v420 = vunpack.c.l.b16 %v383
        %v421 = vunpack.c.h.b16 %v383
        %v422 = vunpack.c.l.b16 %v384
        %v423 = vunpack.c.h.b16 %v384
        %v424 = vunpack.c.l.b16 %v385
        %v425 = vunpack.c.h.b16 %v385
        %v426 = vunpack.c.l.b16 %v386
        %v427 = vunpack.c.h.b16 %v386
        %v428 = vunpack.c.l.b16 %v387
        %v429 = vunpack.c.h.b16 %v387
        %v430 = vunpack.c.l.b16 %v388
        %v431 = vunpack.c.h.b16 %v388
        %v432 = vunpack.c.l.b16 %v389
        %v433 = vunpack.c.h.b16 %v389
        %v434 = vunpack.c.l.b16 %v390
        %v435 = vunpack.c.h.b16 %v390
        %v436 = vunpack.c.l.b16 %v391
        %v437 = vunpack.c.h.b16 %v391
        %v438 = vunpack.c.l.b16 %v392
        %v439 = vunpack.c.h.b16 %v392
        %v440 = vunpack.c.l.b16 %v393
        %v441 = vunpack.c.h.b16 %v393
        %v442 = vpack.c.b16 %v412, %v410
        %v443 = vpack.c.b16 %v413, %v411
        %v444 = vpack.c.b16 %v416, %v414
        %v445 = vpack.c.b16 %v417, %v415
        %v446 = vpack.c.b16 %v420, %v418
        %v447 = vpack.c.b16 %v421, %v419
        %v448 = vpack.c.b16 %v424, %v422
        %v449 = vpack.c.b16 %v425, %v423
        %v450 = vpack.c.b16 %v428, %v426
        %v451 = vpack.c.b16 %v429, %v427
        %v452 = vpack.c.b16 %v432, %v430
        %v453 = vpack.c.b16 %v433, %v431
        %v454 = vpack.c.b16 %v436, %v434
        %v455 = vpack.c.b16 %v437, %v435
        %v456 = vpack.c.b16 %v440, %v438
        %v457 = vpack.c.b16 %v441, %v439
        %474 = vmatprep.subr.bf16.mxu0 %v457
        %475 = vmatpush1.bf16.msra.mxu0 %v456
        %476 = vmatprep.subr.bf16.mxu0 %v455
        %477 = vmatpush1.bf16.msra.mxu0 %v454
        %478 = vmatprep.subr.bf16.mxu0 %v453
        %479 = vmatpush1.bf16.msra.mxu0 %v452
        %480 = vmatprep.subr.bf16.mxu0 %v451
        %481 = vmatpush1.bf16.msra.mxu0 %v450
        %482 = vmatprep.subr.bf16.mxu0 %v449
        %483 = vmatpush1.bf16.msra.mxu0 %v448
        %484 = vmatprep.subr.bf16.mxu0 %v447
        %485 = vmatpush1.bf16.msra.mxu0 %v446
        %486 = vmatprep.subr.bf16.mxu0 %v445
        %487 = vmatpush1.bf16.msra.mxu0 %v444
        %488 = vmatprep.subr.bf16.mxu0 %v443
        %489 = vmatpush1.bf16.msra.mxu0 %v442
        %490 = vmatprep.subr.bf16.mxu0 0
        %491 = vmatpush2.bf16.msra.mxu0 0
        %492 = vmatprep.subr.bf16.mxu0 0
        %493 = vmatpush2.bf16.msra.mxu0 0
        %494 = vmatprep.subr.bf16.mxu0 0
        %495 = vmatpush2.bf16.msra.mxu0 0
        %496 = vmatprep.subr.bf16.mxu0 0
        %497 = vmatpush2.bf16.msra.mxu0 0
        %498 = vmatprep.subr.bf16.mxu0 0
        %499 = vmatpush2.bf16.msra.mxu0 0
        %500 = vmatprep.subr.bf16.mxu0 0
        %501 = vmatpush2.bf16.msra.mxu0 0
        %502 = vmatprep.subr.bf16.mxu0 0
        %503 = vmatpush2.bf16.msra.mxu0 0
        %504 = vmatprep.subr.bf16.mxu0 0
        %505 = vmatpush2.bf16.msra.mxu0 0
        %506 = vmatprep.mubr.bf16.mxu0 0
        %507 = vmatmul.mubr.bf16.gmra.mxu0 %v377
        %v508 = vpop.f32.mrf.mxu0
        %v509 = vadd.f32 0.0, %v508
        %v510 = vpop.f32.mrf.mxu0
        %v511 = vadd.f32 0.0, %v510
        %v512 = vpop.f32.mrf.mxu0
        %v513 = vpop.f32.mrf.mxu0
        %514 = vdwg.mxu0
        %v515 = vld [vmem:[%s291] sm:$0x3]
        %v517 = vlaneseq
        %v518 = vshrl.u32 %v517, 7
        %v519 = vsub.s32 0, %v518
        %v520 = vrot.slane %v515, %v519
        %v521 = vlaneseq
        %v522 = vshrl.u32 %v521, 7
        %v523 = vsub.s32 1, %v522
        %v524 = vrot.slane %v515, %v523
        %v527 = vmul.f32 %v509, %v520
        %v528 = vmul.f32 %v511, %v524
        %s529 = smul.u32 %s28, 512
        %s530 = smul.u32 %s29, 256
        %s531 = sadd.s32 %s529, %s530
        %v532 = vlaneseq
        %v533 = vand.u32 %v532, 127
        %v534 = vadd.s32 %v533, 128
        %v535 = vstv %s531
        %v536 = vadd.s32 %v535, %v533
        %v537 = vadd.s32 %v535, %v534
        %v538 = vld [vmem:[%s0] sm:$0xff]
        %539 = vset.pattern.permute.xlu0 0
        %540 = vperm.xlu0 %539, %v538
        %v541 = vpop.permute.xlu0 %540
        %vm542 = vcmp.eq.s32.totalorder %v536, %v541
        %vm543 = vcmp.eq.s32.totalorder %v537, %v541
        %v544 = vld [vmem:[%s358] sm:$0xff]
        %v545 = vsel %vm542, %v527, 0.0
        %v546 = vsel %vm543, %v528, 0.0
        %v547 = vadd.f32 %v545, %v546
        %548 = vadd.xlane.f32.xlu0 %v547
        %v549 = vpop.xlane.xlu0 %548
        %v550 = vadd.f32 %v544, %v549
        %vm551 = vcmask 7168
        %552 = vst.msk [vmem:[%s358] sm:$0xff] %vm551, %v550
        %v553 = vld [vmem:[%s350] sm:$0xff]
        %v554 = vmax.f32 %v527, %v528
        %555 = vmax.xlane.f32.xlu0 %v554
        %v556 = vpop.xlane.xlu0 %555
        %v557 = vmax.f32 %v553, %v556
        %v558 = vld [vmem:[%s354] sm:$0xff]
        %v559 = vsub.f32 %v553, %v557
        %v560 = vmul.f32 %v559, 1.442695
        %v561 = vpow.pop %v560
        %v562 = vmul.f32 %v558, %v561
        %564 = vset.pattern.permute.xlu0 0
        %565 = vperm.xlu0 %564, %v557
        %v566 = vpop.permute.xlu0 %565
        %v568 = vsub.f32 %v527, %v566
        %v569 = vsub.f32 %v528, %v566
        %v570 = vmul.f32 %v568, 1.442695
        %v571 = vpow.pop %v570
        %v572 = vmul.f32 %v569, 1.442695
        %v573 = vpow.pop %v572
        %v574 = vadd.f32 %v571, %v573
        %575 = vadd.xlane.f32.xlu0 %v574
        %v576 = vpop.xlane.xlu0 %575
        %v577 = vadd.f32 %v562, %v576
        %578 = vst.msk [vmem:[%s354] sm:$0xff] %vm551, %v577
        %579 = vst.msk [vmem:[%s350] sm:$0xff] %vm551, %v557
        %p580 = scmp.lt.s32.totalorder %s28, 1
        %s581 = scalar_select %p580, %s28, 1
        %s582 = smul.addr %s581, 8
        %s583 = scalar_lea.vmem %s4, %s582
        %p584 = scmp.lt.s32.totalorder %s28, 1
        %s585 = scalar_select %p584, %s28, 1
        %s586 = smul.addr %s585, 8
        %s587 = scalar_lea.vmem %s5, %s586
        %p588 = scmp.lt.s32.totalorder %s28, 1
        %s589 = scalar_select %p588, %s28, 1
        %s590 = smul.addr %s589, 8
        %s591 = scalar_lea.vmem %s6, %s590
        // Predicated region
        $region49: #{tpu_custom_call.1} parent=35 // pred_check
          %p592 = pneg %p156
        $region50: #{tpu_custom_call.1} parent=35 // pred_check_branch
          %594 = sbr.rel (%p592) target = $region52
        $region51: #{tpu_custom_call.1} parent=35 // pred_region
          _
        $region52: #{tpu_custom_call.1} parent=35 // pred_fallthru
          _
        // Predicated region
        $region53: #{tpu_custom_call.1} parent=35 // pred_check
          %p595 = pneg %p182
        $region54: #{tpu_custom_call.1} parent=35 // pred_check_branch
          %597 = sbr.rel (%p595) target = $region56
        $region55: #{tpu_custom_call.1} parent=35 // pred_region
          _
        $region56: #{tpu_custom_call.1} parent=35 // pred_fallthru
          _
        // Predicated region
        $region57: #{tpu_custom_call.1} parent=35 // pred_check
          %p598 = pneg %p208
        $region58: #{tpu_custom_call.1} parent=35 // pred_check_branch
          %600 = sbr.rel (%p598) target = $region60
        $region59: #{tpu_custom_call.1} parent=35 // pred_region
          _
        $region60: #{tpu_custom_call.1} parent=35 // pred_fallthru
          _
      $region36: #{tpu_custom_call.1} parent=5 // pred_fallthru
        _
      %p601 = scmp.le.s32.totalorder 2, %s19
      // Predicated region
      $region61: #{tpu_custom_call.1} parent=5 // pred_check
        %p602 = pneg %p601
      $region62: #{tpu_custom_call.1} parent=5 // pred_check_branch
        %604 = sbr.rel (%p602) target = $region64
      $region63: #{tpu_custom_call.1} parent=5 // pred_region
        %s605 = ssub.s32 %s19, 2
        // Predicated region
        $region65: #{tpu_custom_call.1} parent=63 // pred_check
          %p606 = pneg %p162
        $region66: #{tpu_custom_call.1} parent=63 // pred_check_branch
          %608 = sbr.rel (%p606) target = $region68
        $region67: #{tpu_custom_call.1} parent=63 // pred_region
          %p609 = scmp.lt.s32.totalorder %s30, 1
          %s610 = scalar_select %p609, %s30, 1
          %s611 = smul.addr %s610, 8
          %s612 = scalar_lea.vmem %s4, %s611
        $region68: #{tpu_custom_call.1} parent=63 // pred_fallthru
          _
        // Predicated region
        $region69: #{tpu_custom_call.1} parent=63 // pred_check
          %p613 = pneg %p188
        $region70: #{tpu_custom_call.1} parent=63 // pred_check_branch
          %615 = sbr.rel (%p613) target = $region72
        $region71: #{tpu_custom_call.1} parent=63 // pred_region
          %p616 = scmp.lt.s32.totalorder %s30, 1
          %s617 = scalar_select %p616, %s30, 1
          %s618 = smul.addr %s617, 8
          %s619 = scalar_lea.vmem %s5, %s618
        $region72: #{tpu_custom_call.1} parent=63 // pred_fallthru
          _
        // Predicated region
        $region73: #{tpu_custom_call.1} parent=63 // pred_check
          %p620 = pneg %p214
        $region74: #{tpu_custom_call.1} parent=63 // pred_check_branch
          %622 = sbr.rel (%p620) target = $region76
        $region75: #{tpu_custom_call.1} parent=63 // pred_region
          %p623 = scmp.lt.s32.totalorder %s30, 1
          %s624 = scalar_select %p623, %s30, 1
          %s625 = smul.addr %s624, 8
          %s626 = scalar_lea.vmem %s6, %s625
        $region76: #{tpu_custom_call.1} parent=63 // pred_fallthru
          _
      $region64: #{tpu_custom_call.1} parent=5 // pred_fallthru
        _
    $region6: #{tpu_custom_call.1} parent=1 // loop_footer
      %s23 = sadd.s32 1, %s19
    $region7: #{tpu_custom_call.1} parent=1 // loop_footer_branch
      %18 = sbr.rel target = $region3
    $region8: #{tpu_custom_call.1} parent=1 // loop_exit
      _
    %627 = vsyncpa [#allocation4], 1
    %s628 = scalar_lea.sflag [#allocation4], 1
    %629 = vsyncpa %s628, 1
    %630 = vsyncpa [#allocation6], 1
    %s631 = scalar_lea.sflag [#allocation6], 1
    %632 = vsyncpa %s631, 1

</llo_original>
